<compile_context>
chip_gen: v7x
topology: tpu7x:2x2x1
jax: 0.10.0
libtpu: 0.0.40
codegen_flags: <defaults>
</compile_context>

<pallas_src>
import functools

import numpy as np
import jax
import jax.numpy as jnp
from jax.experimental import pallas as pl
from jax.experimental.pallas import tpu as pltpu


# ---------------------------------------------------------------------------
# Host-side precompute (cached): fused circulant noise-shaping matrix.
# ---------------------------------------------------------------------------
def _psd_shape_np(freqs: np.ndarray, noise_type: str) -> np.ndarray:
    """PSD shape functions, mirroring the torch versions (float64 numpy)."""
    if noise_type == "pink":
        return 1.0 / np.where(freqs == 0, np.inf, np.sqrt(freqs))
    if noise_type == "brown":
        return 1.0 / np.where(freqs == 0, np.inf, freqs)
    if noise_type == "blue":
        return np.sqrt(freqs)
    if noise_type == "violet":
        return freqs
    if noise_type == "white":
        return np.ones_like(freqs)
    raise ValueError(f"unknown noise type {noise_type}")


@functools.lru_cache(maxsize=None)
def _fused_noise_matrix(n: int, n_pad: int, noise_type: str) -> np.ndarray:
    """(n_pad, n_pad) f32 matrix M such that irfft(rfft(w) * S) == w @ M[:n, :n].

    Built in float64 on the host (avoids f32 theta = 2*pi*n*k precision loss
    for large N) and cached per (N, n_pad, noise_type)."""
    k = np.arange(n // 2 + 1, dtype=np.float64)
    s = _psd_shape_np(k / n, noise_type)                      # rfftfreq(n) == k/n
    s = s / np.sqrt(np.mean(s ** 2))
    # Hermitian reconstruction weights: 1 for DC and (even-N) Nyquist, else 2.
    weight = np.where((k == 0) | (2 * k == n), 1.0, 2.0)
    coef = weight * s / n                                     # (F,)
    # The fused map is a circular convolution; first column of the circulant:
    d = np.arange(n, dtype=np.float64)
    c = np.cos(2.0 * np.pi * np.outer(d, k) / n) @ coef       # (N,)
    idx = (np.arange(n)[:, None] - np.arange(n)[None, :]) % n
    m = c[idx]                                                # M[i, j] = c[(i-j) % N]
    out = np.zeros((n_pad, n_pad), dtype=np.float32)
    out[:n, :n] = m.astype(np.float32)
    return out


@functools.lru_cache(maxsize=None)
def _fused_noise_matrix_device(n: int, n_pad: int, noise_type: str):
    """Device-resident bf16 fused matrix; uploaded ONCE per (N, n_pad, type)."""
    # TODO(synk): int8 (v5e/v6e) / fp8 (v7x) M with a dequant scale folded into
    # alpha would halve the dominant HBM stream again, but needs per-noise-type
    # error validation ('brown' has the widest coefficient dynamic range).
    m_np = _fused_noise_matrix(n, n_pad, noise_type)
    return jax.device_put(jnp.asarray(m_np, dtype=jnp.bfloat16))


# ---------------------------------------------------------------------------
# Pallas kernel: tiled (B, N) @ (N, N) matmul + elementwise mix.
# ---------------------------------------------------------------------------
def _synthetic_noise_kernel(alpha_ref, w_ref, m_ref, clip_ref, o_ref, acc_ref):
    # alpha_ref : SMEM (1,) f32       w_ref   : (tb, tk) bf16
    # m_ref     : (tk, tn) bf16       clip_ref: (tb, tn) f32
    # o_ref     : (tb, tn) f32        acc_ref : (tb, tn) f32 VMEM scratch
    k = pl.program_id(2)

    @pl.when(k == 0)
    def _():
        acc_ref[...] = jnp.zeros_like(acc_ref)

    acc_ref[...] += jnp.dot(w_ref[...], m_ref[...],
                            preferred_element_type=jnp.float32)

    @pl.when(k == pl.num_programs(2) - 1)
    def _():
        alpha = alpha_ref[0]
        o_ref[...] = (1.0 - alpha) * clip_ref[...] + alpha * acc_ref[...]


def _round_up(x: int, q: int) -> int:
    return ((x + q - 1) // q) * q


def _split_even(total: int, cap: int, quantum: int):
    """Pick tile <= cap (multiple of quantum) and padded total (multiple of tile).

    Pads UP to the tile instead of shrinking the tile to an exact divisor, so
    awkward sizes (e.g. 44.1 kHz clips) keep large, lane-dense tiles."""
    base = _round_up(total, quantum)
    ntiles = pl.cdiv(base, cap)
    tile = _round_up(pl.cdiv(base, ntiles), quantum)
    return tile, tile * ntiles


@functools.partial(jax.jit,
                   static_argnames=("b", "n", "bp", "np_", "tb", "tn", "tk"))
def _synthetic_noise_padded(clip, white, m_bf16, alpha_arr, *,
                            b, n, bp, np_, tb, tn, tk):
    """Padding + pallas_call under jit: pad copies fuse and compile once."""
    clip_p = jnp.pad(clip.astype(jnp.float32), ((0, bp - b), (0, np_ - n)))
    # Pre-cast white to bf16 (halves its HBM/VMEM footprint, no per-k-step cast).
    white_p = jnp.pad(white.astype(jnp.bfloat16), ((0, bp - b), (0, np_ - n)))

    grid = (bp // tb, np_ // tn, np_ // tk)

    out = pl.pallas_call(
        _synthetic_noise_kernel,
        out_shape=jax.ShapeDtypeStruct((bp, np_), jnp.float32),
        grid_spec=pltpu.PrefetchScalarGridSpec(
            num_scalar_prefetch=0,
            grid=grid,
            in_specs=[
                pl.BlockSpec(memory_space=pltpu.MemorySpace.SMEM),     # alpha
                pl.BlockSpec((tb, tk), lambda i, j, k: (i, k)),        # white bf16
                pl.BlockSpec((tk, tn), lambda i, j, k: (k, j)),        # fused M bf16
                pl.BlockSpec((tb, tn), lambda i, j, k: (i, j)),        # clip f32
            ],
            out_specs=pl.BlockSpec((tb, tn), lambda i, j, k: (i, j)),
            scratch_shapes=[pltpu.VMEM((tb, tn), jnp.float32)],
        ),
        compiler_params=pltpu.CompilerParams(
            dimension_semantics=("parallel", "parallel", "arbitrary"),
            # ~28 MiB resident at the tile caps below; 48 MiB limit keeps
            # double-buffering intact on v5e/v6e (128 MiB) and v7x (64 MiB).
            vmem_limit_bytes=48 * 1024 * 1024,
        ),
    )(alpha_arr, white_p, m_bf16, clip_p)
    return out[:b, :n]


def synthetic_noise(clip: jnp.ndarray, white: jnp.ndarray,
                    noise_type: str = "pink", alpha: float = 0.5) -> jnp.ndarray:
    """Pallas implementation of SyntheticNoise.forward for (N,) or (B, N) clips."""
    squeeze = clip.ndim == 1
    if squeeze:
        clip = clip[None, :]
        white = white[None, :]
    B, N = clip.shape

    # Lane axis: tiles up to 1024, padded output multiple of the tile (unmasked
    # vst, long M DMAs, few grid steps).  Batch axis: multiple of 16 (bf16
    # sublane packing), tile up to 1024 so M streams once per whole batch.
    tn, Np = _split_even(N, 1024, 128)
    tk = tn
    tb, Bp = _split_even(B, 1024, 16)

    # v7x has 2 TensorCores: if every parallel axis collapsed to 1 iteration,
    # split the output-lane axis so both cores get work (no-op on v5e/v6e).
    if (Bp // tb) * (Np // tn) == 1 and tn % 256 == 0:
        tn //= 2

    m_dev = _fused_noise_matrix_device(N, Np, noise_type)   # device-cached bf16
    alpha_arr = jnp.asarray([alpha], dtype=jnp.float32)     # SMEM scalar, no recompile

    out = _synthetic_noise_padded(clip, white, m_dev, alpha_arr,
                                  b=B, n=N, bp=Bp, np_=Np, tb=tb, tn=tn, tk=tk)
    return out[0] if squeeze else out


if __name__ == "__main__":
    key = jax.random.PRNGKey(0)
    k_clip, k_white = jax.random.split(key)

    B, N = 8, 256                # small batched demo
    noise_type = "pink"          # cfg.noise_type
    alpha = 0.5                  # cfg.noise_alpha

    clip = jax.random.normal(k_clip, (B, N), dtype=jnp.float32)
    # TODO(synk): torch.rand's host RNG stream is replaced by jax.random.uniform.
    white = jax.random.uniform(k_white, (B, N), dtype=jnp.float32)

    out = synthetic_noise(clip, white, noise_type=noise_type, alpha=alpha)
    out = jax.block_until_ready(out)
    assert out.shape == (B, N) and out.dtype == jnp.float32

    # Second call reuses the device-cached M and the jitted padded pipeline.
    out2 = jax.block_until_ready(
        synthetic_noise(clip, white, noise_type=noise_type, alpha=alpha))
    assert float(jnp.max(jnp.abs(out2 - out))) == 0.0

    # 1) exact FFT reference (bf16 fused-matrix quantization -> loose tolerance)
    freqs = jnp.fft.rfftfreq(N).astype(jnp.float32)
    s_ref = 1.0 / jnp.where(freqs == 0, jnp.inf, jnp.sqrt(freqs))
    s_ref = s_ref / jnp.sqrt(jnp.mean(s_ref ** 2))
    noise_ref = jnp.fft.irfft(jnp.fft.rfft(white, axis=-1) * s_ref, axis=-1)
    ref = (1.0 - alpha) * clip + alpha * noise_ref
    err_fft = float(jnp.max(jnp.abs(out - ref)))
    assert err_fft < 2e-2, err_fft

    # 2) same-math reference (bf16 fused matrix in plain XLA) -> tight kernel check
    m_chk = jnp.asarray(_fused_noise_matrix(N, N, noise_type), dtype=jnp.bfloat16)
    noise_mm = jnp.dot(white.astype(jnp.bfloat16), m_chk,
                       preferred_element_type=jnp.float32)
    ref_mm = (1.0 - alpha) * clip + alpha * noise_mm
    err_mm = float(jnp.max(jnp.abs(out - ref_mm)))
    assert err_mm < 5e-4, err_mm

    # 3) 1-D clip path (original module signature)
    out1 = jax.block_until_ready(
        synthetic_noise(clip[0], white[0], noise_type=noise_type, alpha=alpha))
    assert out1.shape == (N,)
    assert float(jnp.max(jnp.abs(out1 - out[0]))) < 1e-5

    print("KERNEL_OK")
</pallas_src>

<mosaic_0001>
module attributes {stable_mosaic.version = 11 : i64} {
  func.func @_synthetic_noise_kernel(%arg0: i32, %arg1: i32, %arg2: i32, %arg3: memref<1xf32, #tpu.memory_space<smem>>, %arg4: memref<16x256xbf16, #tpu.memory_space<vmem>>, %arg5: memref<256x128xbf16, #tpu.memory_space<vmem>>, %arg6: memref<16x128xf32, #tpu.memory_space<vmem>>, %arg7: memref<16x128xf32, #tpu.memory_space<vmem>>, %arg8: memref<16x128xf32, #tpu.memory_space<vmem>>) attributes {dimension_semantics = [#tpu.dimension_semantics<parallel>, #tpu.dimension_semantics<parallel>, #tpu.dimension_semantics<arbitrary>], iteration_bounds = array<i64: 1, 2, 1>, scalar_prefetch = 0 : i64, scratch_operands = 1 : i64, tpu.core_type = #tpu.core_type<tc>, window_params = [{transform_indices = @transform_0, window_bounds = array<i64: 1>}, {transform_indices = @transform_1, window_bounds = array<i64: 16, 256>}, {transform_indices = @transform_2, window_bounds = array<i64: 256, 128>}, {transform_indices = @transform_3, window_bounds = array<i64: 16, 128>}, {transform_indices = @transform_4, window_bounds = array<i64: 16, 128>}]} {
    %c0_i32 = arith.constant 0 : i32
    %0 = arith.cmpi eq, %arg2, %c0_i32 : i32
    %1 = arith.extui %0 : i1 to i32
    %c0_i32_0 = arith.constant 0 : i32
    %2 = arith.cmpi ne, %1, %c0_i32_0 : i32
    scf.if %2 {
      %cst_10 = arith.constant 0.000000e+00 : f32
      %12 = vector.broadcast %cst_10 : f32 to vector<16x128xf32>
      %c0_11 = arith.constant 0 : index
      %c0_12 = arith.constant 0 : index
      %13 = vector.load %arg8[%c0_11, %c0_12] : memref<16x128xf32, #tpu.memory_space<vmem>>, vector<16x128xf32>
      tpu.vector_store %arg8[%c0_11, %c0_12], %12 {strides = array<i32>} : memref<16x128xf32, #tpu.memory_space<vmem>>, vector<16x128xf32>,
    } else {
    }
    %c0 = arith.constant 0 : index
    %c0_1 = arith.constant 0 : index
    %3 = vector.load %arg8[%c0, %c0_1] : memref<16x128xf32, #tpu.memory_space<vmem>>, vector<16x128xf32>
    %c0_2 = arith.constant 0 : index
    %c0_3 = arith.constant 0 : index
    %4 = vector.load %arg4[%c0_2, %c0_3] : memref<16x256xbf16, #tpu.memory_space<vmem>>, vector<16x256xbf16>
    %c0_4 = arith.constant 0 : index
    %c0_5 = arith.constant 0 : index
    %5 = vector.load %arg5[%c0_4, %c0_5] : memref<256x128xbf16, #tpu.memory_space<vmem>>, vector<256x128xbf16>
    %cst = arith.constant dense<0.000000e+00> : vector<16x128xf32>
    %6 = tpu.matmul %4, %5, %cst {dimension_numbers = #tpu.dot_dimension_numbers<[1], [0], [0], [1], [0, 0, 1, 1], [], []>} : vector<16x256xbf16>, vector<256x128xbf16>, vector<16x128xf32> -> vector<16x128xf32>
    %7 = arith.addf %3, %6 : vector<16x128xf32>
    %c0_6 = arith.constant 0 : index
    %c0_7 = arith.constant 0 : index
    %8 = vector.load %arg8[%c0_6, %c0_7] : memref<16x128xf32, #tpu.memory_space<vmem>>, vector<16x128xf32>
    tpu.vector_store %arg8[%c0_6, %c0_7], %7 {strides = array<i32>} : memref<16x128xf32, #tpu.memory_space<vmem>>, vector<16x128xf32>,
    %c0_i32_8 = arith.constant 0 : i32
    %9 = arith.cmpi eq, %arg2, %c0_i32_8 : i32
    %10 = arith.extui %9 : i1 to i32
    %c0_i32_9 = arith.constant 0 : i32
    %11 = arith.cmpi ne, %10, %c0_i32_9 : i32
    scf.if %11 {
      %c0_10 = arith.constant 0 : index
      %12 = memref.load %arg3[%c0_10] : memref<1xf32, #tpu.memory_space<smem>>
      %cst_11 = arith.constant 1.000000e+00 : f32
      %13 = arith.subf %cst_11, %12 : f32
      %c0_12 = arith.constant 0 : index
      %c0_13 = arith.constant 0 : index
      %14 = vector.load %arg6[%c0_12, %c0_13] : memref<16x128xf32, #tpu.memory_space<vmem>>, vector<16x128xf32>
      %15 = vector.broadcast %13 : f32 to vector<16x128xf32>
      %16 = arith.mulf %15, %14 : vector<16x128xf32>
      %c0_14 = arith.constant 0 : index
      %c0_15 = arith.constant 0 : index
      %17 = vector.load %arg8[%c0_14, %c0_15] : memref<16x128xf32, #tpu.memory_space<vmem>>, vector<16x128xf32>
      %18 = vector.broadcast %12 : f32 to vector<16x128xf32>
      %19 = arith.mulf %18, %17 : vector<16x128xf32>
      %20 = arith.addf %16, %19 : vector<16x128xf32>
      %c0_16 = arith.constant 0 : index
      %c0_17 = arith.constant 0 : index
      %21 = vector.load %arg7[%c0_16, %c0_17] : memref<16x128xf32, #tpu.memory_space<vmem>>, vector<16x128xf32>
      tpu.vector_store %arg7[%c0_16, %c0_17], %20 {strides = array<i32>} : memref<16x128xf32, #tpu.memory_space<vmem>>, vector<16x128xf32>,
    } else {
    }
    return
  }
  func.func @transform_0(%arg0: i32, %arg1: i32, %arg2: i32) -> i32 {
    %c0_i32 = arith.constant 0 : i32
    %c0_i32_0 = arith.constant 0 : i32
    return %c0_i32 : i32
  }
  func.func @transform_1(%arg0: i32, %arg1: i32, %arg2: i32) -> (i32, i32) {
    %c0_i32 = arith.constant 0 : i32
    return %arg0, %arg2 : i32, i32
  }
  func.func @transform_2(%arg0: i32, %arg1: i32, %arg2: i32) -> (i32, i32) {
    %c0_i32 = arith.constant 0 : i32
    return %arg2, %arg1 : i32, i32
  }
  func.func @transform_3(%arg0: i32, %arg1: i32, %arg2: i32) -> (i32, i32) {
    %c0_i32 = arith.constant 0 : i32
    return %arg0, %arg1 : i32, i32
  }
  func.func @transform_4(%arg0: i32, %arg1: i32, %arg2: i32) -> (i32, i32) {
    %c0_i32 = arith.constant 0 : i32
    return %arg0, %arg1 : i32, i32
  }
}

</mosaic_0001>

<llo_original>
// kernel: _synthetic_noise_padded.1
$region0: #{_synthetic_noise_padded.1}
  #allocation0 [shape = 'u32[]', space=smem, size = 0x4, offset = 0x4, fixed_abs, tag = 'smem constant byte address 0x4 - core index']
  #allocation1 [shape = 'u32[144,128]{1,0:T(1,128)}', space=vmem, size = 0x12000, scoped, tag = 'internal scratch']
  #allocation2 [shape = 'f32[16,128]{1,0:T(8,128)}', space=vmem, size = 0x2000, scoped, tag = 'scratch operand']
  #allocation3 [shape = 'f32[1]{0:T(128)S(6)}', space=smem, size = 0x200, scoped, tag = 'scoped memory for _synthetic_noise_padded.1']
  %s0 = inlined_call_operand.<no memory space> [shape: f32[1], index: 0, kind: input, shape index: {}]
  %s1 = inlined_call_operand.vmem [shape: bf16[16,256], index: 1, kind: input, shape index: {}]
  %s2 = inlined_call_operand.hbm [shape: bf16[256,256], index: 2, kind: input, shape index: {}]
  %s3 = inlined_call_operand.vmem [shape: f32[16,256], index: 3, kind: input, shape index: {}]
  %s4 = inlined_call_operand.vmem [shape: f32[16,256], index: 4, kind: output, shape index: {}]
  %s5 = sld [smem:[#allocation0]]
  $region133: #{_synthetic_noise_padded.1} parent=0
    _
  %s7 = ssub.s32 1, %s5
  %s8 = scalar_select 0, %s7, %s5
  %9 = sst [smem:[#allocation3]] %s0
  $region1: #{_synthetic_noise_padded.1} parent=0
    #allocation4 [shape = 'u8[131072]{0}', space=vmem, size = 0x20000, scoped, tag = 'input window, operand 2']
    #allocation5 [shape = 's32[2]{0}', space=sflag, size = 0x8, scoped, tag = 'scoped memory for _synthetic_noise_padded.1']
    #allocation6 [shape = 'u8[16384]{0}', space=vmem, size = 0x4000, scoped, tag = 'input window, operand 3']
    #allocation7 [shape = 'u8[16384]{0}', space=vmem, size = 0x4000, scoped, tag = 'output window, operand 0']
    %10 = vsyncpa [#allocation5], 0
    %s11 = scalar_lea.sflag [#allocation5], 1
    %12 = vsyncpa %s11, 0
    loop: start=0, step=1, limit=4
    $region2: #{_synthetic_noise_padded.1} parent=1 // loop_pre_header
      _
    $region3: #{_synthetic_noise_padded.1} parent=1 // loop_header
      %s14 = sphi 0, %s18
      %p15 = scmp.ge.s32.totalorder %s14, 4
      %s21 = sphi 0, %s40
      %s22 = sphi 0, %s36
      %s23 = sphi 0, %s32
      %s24 = sphi 0, %s21
      %s25 = sphi 0, %s22
      %s26 = sphi 0, %s23
      %s27 = sphi 0, %s24
      %s28 = sphi 0, %s25
      %s29 = sphi 0, %s26
      %s41 = sphi 0, %s41
      %s43 = sphi 0, %s41
      %s44 = sphi 0, %s43
      %s58 = sphi 0, %s44
      %s66 = sphi 0, %s68
      %s69 = sphi 0, %s66
      %s70 = sphi 0, %s69
      %s86 = sphi 0, %s70
      %s94 = sphi 0, %s96
      %s97 = sphi 0, %s94
      %s98 = sphi 0, %s97
      %s114 = sphi 0, %s98
      %s122 = sphi 0, %s124
      %s125 = sphi 0, %s122
      %s126 = sphi 0, %s125
      %s142 = sphi 0, %s126
      %s150 = sphi 0, %s152
      %s153 = sphi 0, %s150
      %s154 = sphi 0, %s153
      %s170 = sphi 0, %s154
    $region4: #{_synthetic_noise_padded.1} parent=1 // loop_header_branch
      %17 = sbr.rel (%p15) target = $region8
    $region5: #{_synthetic_noise_padded.1} parent=1 // loop_body
      %s19 = ssub.s32 %s14, 1
      %s20 = ssub.s32 %s14, 2
      %s30 = sadd.s32 1, %s23
      %p31 = scmp.ge.s32.totalorder %s30, 1
      %s32 = scalar_select %p31, 0, %s30
      %s33 = sadd.s32 1, %s22
      %s34 = scalar_select %p31, %s33, %s22
      %p35 = scmp.ge.s32.totalorder %s34, 2
      %s36 = scalar_select %p35, 0, %s34
      %s37 = sadd.s32 1, %s21
      %s38 = scalar_select %p35, %s37, %s21
      %p39 = scmp.ge.s32.totalorder %s38, 1
      %s40 = scalar_select %p39, 0, %s38
      %s42 = sadd.s32 %s41, 1
      %p45 = scmp.eq.s32.totalorder %s14, 1
      %p46 = scmp.ne.s32.totalorder %s41, %s43
      %p47 = scmp.eq.s32.totalorder %s14, 0
      %p48 = por %p46, %p47
      %p49 = scmp.ne.s32.totalorder %s41, %s43
      %p50 = scmp.eq.s32.totalorder %s19, 1
      %p51 = por %p49, %p50
      %p52 = scmp.ne.s32.totalorder %s43, %s44
      %p53 = scmp.eq.s32.totalorder %s19, 0
      %p54 = por %p52, %p53
      %p55 = scmp.ne.s32.totalorder %s43, %s44
      %p56 = scmp.eq.s32.totalorder %s20, 1
      %p57 = por %p55, %p56
      %p59 = scmp.ne.s32.totalorder %s44, %s58
      %p60 = scmp.eq.s32.totalorder %s20, 0
      %p61 = por %p59, %p60
      %s62 = ssub.s32 %s21, %s40
      %s63 = ssub.s32 %s23, %s32
      %s64 = sor.u32 %s62, %s63
      %p65 = scmp.eq.s32.totalorder %s64, 0
      %s67 = sadd.s32 %s66, 1
      %s68 = scalar_select %p65, %s66, %s67
      %p71 = pneg %p65
      %p72 = scmp.eq.s32.totalorder %s14, 1
      %p73 = por %p71, %p72
      %p74 = scmp.ne.s32.totalorder %s66, %s69
      %p75 = scmp.eq.s32.totalorder %s14, 0
      %p76 = por %p74, %p75
      %p77 = scmp.ne.s32.totalorder %s66, %s69
      %p78 = scmp.eq.s32.totalorder %s19, 1
      %p79 = por %p77, %p78
      %p80 = scmp.ne.s32.totalorder %s69, %s70
      %p81 = scmp.eq.s32.totalorder %s19, 0
      %p82 = por %p80, %p81
      %p83 = scmp.ne.s32.totalorder %s69, %s70
      %p84 = scmp.eq.s32.totalorder %s20, 1
      %p85 = por %p83, %p84
      %p87 = scmp.ne.s32.totalorder %s70, %s86
      %p88 = scmp.eq.s32.totalorder %s20, 0
      %p89 = por %p87, %p88
      %s90 = ssub.s32 %s23, %s32
      %s91 = ssub.s32 %s22, %s36
      %s92 = sor.u32 %s90, %s91
      %p93 = scmp.eq.s32.totalorder %s92, 0
      %s95 = sadd.s32 %s94, 1
      %s96 = scalar_select %p93, %s94, %s95
      %p99 = pneg %p93
      %p100 = scmp.eq.s32.totalorder %s14, 1
      %p101 = por %p99, %p100
      %p102 = scmp.ne.s32.totalorder %s94, %s97
      %p103 = scmp.eq.s32.totalorder %s14, 0
      %p104 = por %p102, %p103
      %p105 = scmp.ne.s32.totalorder %s94, %s97
      %p106 = scmp.eq.s32.totalorder %s19, 1
      %p107 = por %p105, %p106
      %p108 = scmp.ne.s32.totalorder %s97, %s98
      %p109 = scmp.eq.s32.totalorder %s19, 0
      %p110 = por %p108, %p109
      %p111 = scmp.ne.s32.totalorder %s97, %s98
      %p112 = scmp.eq.s32.totalorder %s20, 1
      %p113 = por %p111, %p112
      %p115 = scmp.ne.s32.totalorder %s98, %s114
      %p116 = scmp.eq.s32.totalorder %s20, 0
      %p117 = por %p115, %p116
      %s118 = ssub.s32 %s21, %s40
      %s119 = ssub.s32 %s22, %s36
      %s120 = sor.u32 %s118, %s119
      %p121 = scmp.eq.s32.totalorder %s120, 0
      %s123 = sadd.s32 %s122, 1
      %s124 = scalar_select %p121, %s122, %s123
      %p127 = pneg %p121
      %p128 = scmp.eq.s32.totalorder %s14, 1
      %p129 = por %p127, %p128
      %p130 = scmp.ne.s32.totalorder %s122, %s125
      %p131 = scmp.eq.s32.totalorder %s14, 0
      %p132 = por %p130, %p131
      %p133 = scmp.ne.s32.totalorder %s122, %s125
      %p134 = scmp.eq.s32.totalorder %s19, 1
      %p135 = por %p133, %p134
      %p136 = scmp.ne.s32.totalorder %s125, %s126
      %p137 = scmp.eq.s32.totalorder %s19, 0
      %p138 = por %p136, %p137
      %p139 = scmp.ne.s32.totalorder %s125, %s126
      %p140 = scmp.eq.s32.totalorder %s20, 1
      %p141 = por %p139, %p140
      %p143 = scmp.ne.s32.totalorder %s126, %s142
      %p144 = scmp.eq.s32.totalorder %s20, 0
      %p145 = por %p143, %p144
      %s146 = ssub.s32 %s21, %s40
      %s147 = ssub.s32 %s22, %s36
      %s148 = sor.u32 %s146, %s147
      %p149 = scmp.eq.s32.totalorder %s148, 0
      %s151 = sadd.s32 %s150, 1
      %s152 = scalar_select %p149, %s150, %s151
      %p155 = pneg %p149
      %p156 = scmp.eq.s32.totalorder %s14, 1
      %p157 = por %p155, %p156
      %p158 = scmp.ne.s32.totalorder %s150, %s153
      %p159 = scmp.eq.s32.totalorder %s14, 0
      %p160 = por %p158, %p159
      %p161 = scmp.ne.s32.totalorder %s150, %s153
      %p162 = scmp.eq.s32.totalorder %s19, 1
      %p163 = por %p161, %p162
      %p164 = scmp.ne.s32.totalorder %s153, %s154
      %p165 = scmp.eq.s32.totalorder %s19, 0
      %p166 = por %p164, %p165
      %p167 = scmp.ne.s32.totalorder %s153, %s154
      %p168 = scmp.eq.s32.totalorder %s20, 1
      %p169 = por %p167, %p168
      %p171 = scmp.ne.s32.totalorder %s154, %s170
      %p172 = scmp.eq.s32.totalorder %s20, 0
      %p173 = por %p171, %p172
      %p174 = scmp.le.s32.totalorder 1, %s14
      %p175 = scmp.lt.s32.totalorder %s14, 3
      %p176 = pnand %p174, %p175
      %p177 = pneg %p176
      // Predicated region
      $region9: #{_synthetic_noise_padded.1} parent=5 // pred_check
        _
      $region10: #{_synthetic_noise_padded.1} parent=5 // pred_check_branch
        %179 = sbr.rel (%p176) target = $region12
      $region11: #{_synthetic_noise_padded.1} parent=5 // pred_region
        %s180 = ssub.s32 %s14, 1
        // Predicated region
        $region13: #{_synthetic_noise_padded.1} parent=11 // pred_check
          %p181 = pneg %p54
        $region14: #{_synthetic_noise_padded.1} parent=11 // pred_check_branch
          %183 = sbr.rel (%p181) target = $region16
        $region15: #{_synthetic_noise_padded.1} parent=11 // pred_region
          _
        $region16: #{_synthetic_noise_padded.1} parent=11 // pred_fallthru
          _
        // Predicated region
        $region17: #{_synthetic_noise_padded.1} parent=11 // pred_check
          %p184 = pneg %p82
        $region18: #{_synthetic_noise_padded.1} parent=11 // pred_check_branch
          %186 = sbr.rel (%p184) target = $region20
        $region19: #{_synthetic_noise_padded.1} parent=11 // pred_region
          %s187 = smul.u32 2, %s24
          %s188 = smul.u32 2, %s26
          %p189 = scmp.lt.s32.totalorder %s187, 1
          %s190 = scalar_select %p189, %s187, 1
          %p191 = scmp.lt.s32.totalorder %s188, 1
          %s192 = scalar_select %p191, %s188, 1
          %s193 = smul.addr %s190, 2
          %s194 = sadd.s32 %s192, %s193
          %s195 = smul.addr %s194, 4
          %s196 = scalar_lea.vmem %s1, %s195
          %s197 = smul.u32 2, %s24
          %s198 = smul.u32 2, %s26
        $region20: #{_synthetic_noise_padded.1} parent=11 // pred_fallthru
          _
      $region12: #{_synthetic_noise_padded.1} parent=5 // pred_fallthru
        _
      %p199 = scmp.lt.s32.totalorder %s14, 2
      // Predicated region
      $region21: #{_synthetic_noise_padded.1} parent=5 // pred_check
        %p200 = pneg %p199
      $region22: #{_synthetic_noise_padded.1} parent=5 // pred_check_branch
        %202 = sbr.rel (%p200) target = $region24
      $region23: #{_synthetic_noise_padded.1} parent=5 // pred_region
        // Predicated region
        $region25: #{_synthetic_noise_padded.1} parent=23 // pred_check
          %p203 = pneg %p104
        $region26: #{_synthetic_noise_padded.1} parent=23 // pred_check_branch
          %205 = sbr.rel (%p203) target = $region28
        $region27: #{_synthetic_noise_padded.1} parent=23 // pred_region
          %s206 = sand.u32 %s94, 1
          %s207 = scalar_lea.sflag [#allocation5], %s206
          %s208 = sand.u32 %s94, 1
          %s209 = smul.addr %s208, 128
          %s210 = scalar_lea.vmem [#allocation4], %s209
          %s211 = smul.u32 32, %s23
          %s213 = ssub.s32 2048, 2048
          %214 = vsyncadd %s207, %s213
          %s215 = smul.addr %s211, 2
          %s216 = sadd.s32 %s22, %s215
          %s217 = smul.addr %s216, 64
          %s218 = scalar_lea.hbm %s2, %s217
          %s219 = sshll.u32 %s210, 4
          %s220 = int_to_ptr.vmem [resolvable:$true] %s219
          %225 = dma.hbm_to_vmem [thread:$0]  %s218, 2048, %s220, %s207, 128, 64, 4
        $region28: #{_synthetic_noise_padded.1} parent=23 // pred_fallthru
          _
        // Predicated region
        $region29: #{_synthetic_noise_padded.1} parent=23 // pred_check
          %p226 = pneg %p132
        $region30: #{_synthetic_noise_padded.1} parent=23 // pred_check_branch
          %228 = sbr.rel (%p226) target = $region32
        $region31: #{_synthetic_noise_padded.1} parent=23 // pred_region
          %s229 = sand.u32 %s122, 1
          %s230 = sand.u32 %s122, 1
          %s231 = smul.addr %s230, 16
          %s232 = scalar_lea.vmem [#allocation6], %s231
          %s233 = smul.u32 2, %s21
          %s234 = smul.addr %s233, 2
          %s235 = sadd.s32 %s22, %s234
          %s236 = smul.addr %s235, 8
          %s237 = scalar_lea.vmem %s3, %s236
          // Predicated region
          $region33: #{_synthetic_noise_padded.1} parent=31 // pred_check
            _
          $region34: #{_synthetic_noise_padded.1} parent=31 // pred_check_branch
            %239 = sbr.rel (0) target = $region36
          $region35: #{_synthetic_noise_padded.1} parent=31 // pred_region
            // Predicated region
            $region37: #{_synthetic_noise_padded.1} parent=35 // pred_check
              _
            $region38: #{_synthetic_noise_padded.1} parent=35 // pred_check_branch
              %241 = sbr.rel (0) target = $region40
            $region39: #{_synthetic_noise_padded.1} parent=35 // pred_region
              // Predicated region
              $region52: #{_synthetic_noise_padded.1} parent=39 // pred_check
                _
              $region53: #{_synthetic_noise_padded.1} parent=39 // pred_check_branch
                %258 = sbr.rel (0) target = $region55
              $region54: #{_synthetic_noise_padded.1} parent=39 // pred_region
                loop: start=0, step=1, limit=1
                $region56: #{_synthetic_noise_padded.1} parent=54 // loop_pre_header
                  _
                $region57: #{_synthetic_noise_padded.1} parent=54 // loop_header
                  %s260 = sphi 0, %s264
                  %p261 = scmp.ge.s32.totalorder %s260, 1
                  %s265 = sphi %s237, %s237
                  %s266 = sphi %s232, %s232
                $region58: #{_synthetic_noise_padded.1} parent=54 // loop_header_branch
                  %263 = sbr.rel (%p261) target = $region62
                $region59: #{_synthetic_noise_padded.1} parent=54 // loop_body
                  %v267 = vld [vmem:[%s265] sm:$0xff]
                  %268 = vst [vmem:[%s266] sm:$0xff] %v267
                  %v269 = vld [vmem:[%s265 + $0x10] sm:$0xff]
                  %270 = vst [vmem:[%s266 + $0x8] sm:$0xff] %v269
                $region60: #{_synthetic_noise_padded.1} parent=54 // loop_footer
                  %s264 = sadd.s32 1, %s260
                $region61: #{_synthetic_noise_padded.1} parent=54 // loop_footer_branch
                  %259 = sbr.rel target = $region57
                $region62: #{_synthetic_noise_padded.1} parent=54 // loop_exit
                  _
              $region55: #{_synthetic_noise_padded.1} parent=39 // pred_fallthru
                _
              // Predicated region
              $region63: #{_synthetic_noise_padded.1} parent=39 // pred_check
                _
              $region64: #{_synthetic_noise_padded.1} parent=39 // pred_check_branch
                %272 = sbr.rel target = $region66
              $region65: #{_synthetic_noise_padded.1} parent=39 // pred_region
                _
              $region66: #{_synthetic_noise_padded.1} parent=39 // pred_fallthru
                _
            $region40: #{_synthetic_noise_padded.1} parent=35 // pred_fallthru
              _
            // Predicated region
            $region41: #{_synthetic_noise_padded.1} parent=35 // pred_check
              _
            $region42: #{_synthetic_noise_padded.1} parent=35 // pred_check_branch
              %243 = sbr.rel target = $region44
            $region43: #{_synthetic_noise_padded.1} parent=35 // pred_region
              loop: start=0, step=1, limit=1
              $region45: #{_synthetic_noise_padded.1} parent=43 // loop_pre_header
                _
              $region46: #{_synthetic_noise_padded.1} parent=43 // loop_header
                %s246 = sphi 0, %s250
                %p247 = scmp.ge.s32.totalorder %s246, 1
                %s251 = sphi %s237, %s237
                %s252 = sphi %s232, %s232
              $region47: #{_synthetic_noise_padded.1} parent=43 // loop_header_branch
                %249 = sbr.rel (%p247) target = $region51
              $region48: #{_synthetic_noise_padded.1} parent=43 // loop_body
                %v253 = vld [vmem:[%s251] sm:$0xff]
                %254 = vst [vmem:[%s252] sm:$0xff] %v253
                %v255 = vld [vmem:[%s251 + $0x10] sm:$0xff]
                %256 = vst [vmem:[%s252 + $0x8] sm:$0xff] %v255
              $region49: #{_synthetic_noise_padded.1} parent=43 // loop_footer
                %s250 = sadd.s32 1, %s246
              $region50: #{_synthetic_noise_padded.1} parent=43 // loop_footer_branch
                %245 = sbr.rel target = $region46
              $region51: #{_synthetic_noise_padded.1} parent=43 // loop_exit
                _
            $region44: #{_synthetic_noise_padded.1} parent=35 // pred_fallthru
              _
          $region36: #{_synthetic_noise_padded.1} parent=31 // pred_fallthru
            _
          %273 = vnop
        $region32: #{_synthetic_noise_padded.1} parent=23 // pred_fallthru
          _
      $region24: #{_synthetic_noise_padded.1} parent=5 // pred_fallthru
        _
      %p274 = scmp.le.s32.totalorder 1, %s14
      %p275 = scmp.lt.s32.totalorder %s14, 3
      %p276 = pnand %p274, %p275
      %p277 = pneg %p276
      // Predicated region
      $region67: #{_synthetic_noise_padded.1} parent=5 // pred_check
        _
      $region68: #{_synthetic_noise_padded.1} parent=5 // pred_check_branch
        %279 = sbr.rel (%p276) target = $region70
      $region69: #{_synthetic_noise_padded.1} parent=5 // pred_region
        %s280 = ssub.s32 %s14, 1
        %s281 = sand.u32 %s97, 1
        %s282 = scalar_lea.sflag [#allocation5], %s281
        %s283 = sand.u32 %s97, 1
        %s284 = smul.addr %s283, 128
        %s285 = scalar_lea.vmem [#allocation4], %s284
        // Predicated region
        $region71: #{_synthetic_noise_padded.1} parent=69 // pred_check
          %p286 = pneg %p110
        $region72: #{_synthetic_noise_padded.1} parent=69 // pred_check_branch
          %288 = sbr.rel (%p286) target = $region74
        $region73: #{_synthetic_noise_padded.1} parent=69 // pred_region
          %289 = dma.done %s282, 2048
        $region74: #{_synthetic_noise_padded.1} parent=69 // pred_fallthru
          _
        %s290 = sand.u32 %s125, 1
        %s291 = sand.u32 %s125, 1
        %s292 = smul.addr %s291, 16
        %s293 = scalar_lea.vmem [#allocation6], %s292
        // Predicated region
        $region75: #{_synthetic_noise_padded.1} parent=69 // pred_check
          %p294 = pneg %p138
        $region76: #{_synthetic_noise_padded.1} parent=69 // pred_check_branch
          %296 = sbr.rel (%p294) target = $region78
        $region77: #{_synthetic_noise_padded.1} parent=69 // pred_region
          _
        $region78: #{_synthetic_noise_padded.1} parent=69 // pred_fallthru
          _
        %p297 = pneg %p54
        %p298 = pneg %p51
        %s299 = smul.u32 2, %s24
        %s300 = smul.u32 2, %s26
        %p301 = scmp.lt.s32.totalorder %s299, 1
        %s302 = scalar_select %p301, %s299, 1
        %p303 = scmp.lt.s32.totalorder %s300, 1
        %s304 = scalar_select %p303, %s300, 1
        %s305 = smul.addr %s302, 2
        %s306 = sadd.s32 %s304, %s305
        %s307 = smul.addr %s306, 4
        %s308 = scalar_lea.vmem %s1, %s307
        %p309 = pneg %p82
        %p310 = pneg %p79
        %s311 = sand.u32 %s97, 1
        %s312 = scalar_lea.sflag [#allocation5], %s311
        %s313 = sand.u32 %s97, 1
        %s314 = smul.addr %s313, 128
        %s315 = scalar_lea.vmem [#allocation4], %s314
        %p316 = pneg %p110
        %p317 = pneg %p107
        %s318 = sand.u32 %s125, 1
        %s319 = sand.u32 %s125, 1
        %s320 = smul.addr %s319, 16
        %s321 = scalar_lea.vmem [#allocation6], %s320
        %p322 = pneg %p138
        %p323 = pneg %p135
        %p324 = pneg %p166
        %p325 = pneg %p163
        %s326 = sand.u32 %s153, 1
        %s327 = sand.u32 %s153, 1
        %s328 = smul.addr %s327, 16
        %s329 = scalar_lea.vmem [#allocation7], %s328
        %s330 = smul.u32 2, %s24
        %s331 = smul.u32 2, %s26
        %p332 = scmp.lt.s32.totalorder %s330, 1
        %s333 = scalar_select %p332, %s330, 1
        %p334 = scmp.lt.s32.totalorder %s331, 1
        %s335 = scalar_select %p334, %s331, 1
        %s336 = smul.addr %s333, 2
        %s337 = sadd.s32 %s335, %s336
        %s338 = smul.addr %s337, 4
        %s339 = scalar_lea.vmem %s1, %s338
        %s340 = smul.u32 2, %s24
        %s341 = smul.u32 2, %s26
        %s342 = smul.u32 32, %s26
        %s343 = smul.u32 2, %s24
        %s344 = smul.u32 2, %s24
        %p346 = scmp.eq.s32.totalorder %s26, 0
        // Predicated region
        $region79: #{_synthetic_noise_padded.1} parent=69 // pred_check
          %p347 = pneg %p346
        $region80: #{_synthetic_noise_padded.1} parent=69 // pred_check_branch
          %349 = sbr.rel (%p347) target = $region82
        $region81: #{_synthetic_noise_padded.1} parent=69 // pred_region
          %350 = vst [vmem:[#allocation2] sm:$0xff] 0.0
          %351 = vst [vmem:[#allocation2 + $0x8] sm:$0xff] 0.0
        $region82: #{_synthetic_noise_padded.1} parent=69 // pred_fallthru
          _
        %v352 = vld [vmem:[#allocation2] sm:$0xff]
        %v353 = vld [vmem:[#allocation2 + $0x8] sm:$0xff]
        %v354 = vld [vmem:[%s339] sm:$0xff]
        %v355 = vld [vmem:[%s339 + $0x8] sm:$0xff]
        %v356 = vld [vmem:[%s285] sm:$0xf]
        %v357 = vld [vmem:[%s285 + $0x4] sm:$0xf]
        %v358 = vld [vmem:[%s285 + $0x8] sm:$0xf]
        %v359 = vld [vmem:[%s285 + $0xc] sm:$0xf]
        %v360 = vld [vmem:[%s285 + $0x10] sm:$0xf]
        %v361 = vld [vmem:[%s285 + $0x14] sm:$0xf]
        %v362 = vld [vmem:[%s285 + $0x18] sm:$0xf]
        %v363 = vld [vmem:[%s285 + $0x1c] sm:$0xf]
        %v364 = vld [vmem:[%s285 + $0x20] sm:$0xf]
        %v365 = vld [vmem:[%s285 + $0x24] sm:$0xf]
        %v366 = vld [vmem:[%s285 + $0x28] sm:$0xf]
        %v367 = vld [vmem:[%s285 + $0x2c] sm:$0xf]
        %v368 = vld [vmem:[%s285 + $0x30] sm:$0xf]
        %v369 = vld [vmem:[%s285 + $0x34] sm:$0xf]
        %v370 = vld [vmem:[%s285 + $0x38] sm:$0xf]
        %v371 = vld [vmem:[%s285 + $0x3c] sm:$0xf]
        %v372 = vld [vmem:[%s285 + $0x40] sm:$0xf]
        %v373 = vld [vmem:[%s285 + $0x44] sm:$0xf]
        %v374 = vld [vmem:[%s285 + $0x48] sm:$0xf]
        %v375 = vld [vmem:[%s285 + $0x4c] sm:$0xf]
        %v376 = vld [vmem:[%s285 + $0x50] sm:$0xf]
        %v377 = vld [vmem:[%s285 + $0x54] sm:$0xf]
        %v378 = vld [vmem:[%s285 + $0x58] sm:$0xf]
        %v379 = vld [vmem:[%s285 + $0x5c] sm:$0xf]
        %v380 = vld [vmem:[%s285 + $0x60] sm:$0xf]
        %v381 = vld [vmem:[%s285 + $0x64] sm:$0xf]
        %v382 = vld [vmem:[%s285 + $0x68] sm:$0xf]
        %v383 = vld [vmem:[%s285 + $0x6c] sm:$0xf]
        %v384 = vld [vmem:[%s285 + $0x70] sm:$0xf]
        %v385 = vld [vmem:[%s285 + $0x74] sm:$0xf]
        %v386 = vld [vmem:[%s285 + $0x78] sm:$0xf]
        %v387 = vld [vmem:[%s285 + $0x7c] sm:$0xf]
        %v390 = vunpack.c.l.b16 %v354
        %v391 = vunpack.c.h.b16 %v354
        %v392 = vunpack.c.l.b16 %v355
        %v393 = vunpack.c.h.b16 %v355
        %v394 = vpack.c.b16 %v392, %v390
        %v395 = vpack.c.b16 %v393, %v391
        %v430 = vunpack.c.l.b16 %v356
        %v431 = vunpack.c.l.b16 %v357
        %v432 = vunpack.c.l.b16 %v358
        %v433 = vunpack.c.l.b16 %v359
        %v434 = vunpack.c.l.b16 %v360
        %v435 = vunpack.c.l.b16 %v361
        %v436 = vunpack.c.l.b16 %v362
        %v437 = vunpack.c.l.b16 %v363
        %v438 = vunpack.c.l.b16 %v364
        %v439 = vunpack.c.l.b16 %v365
        %v440 = vunpack.c.l.b16 %v366
        %v441 = vunpack.c.l.b16 %v367
        %v442 = vunpack.c.l.b16 %v368
        %v443 = vunpack.c.l.b16 %v369
        %v444 = vunpack.c.l.b16 %v370
        %v445 = vunpack.c.l.b16 %v371
        %v446 = vunpack.c.l.b16 %v372
        %v447 = vunpack.c.l.b16 %v373
        %v448 = vunpack.c.l.b16 %v374
        %v449 = vunpack.c.l.b16 %v375
        %v450 = vunpack.c.l.b16 %v376
        %v451 = vunpack.c.l.b16 %v377
        %v452 = vunpack.c.l.b16 %v378
        %v453 = vunpack.c.l.b16 %v379
        %v454 = vunpack.c.l.b16 %v380
        %v455 = vunpack.c.l.b16 %v381
        %v456 = vunpack.c.l.b16 %v382
        %v457 = vunpack.c.l.b16 %v383
        %v458 = vunpack.c.l.b16 %v384
        %v459 = vunpack.c.l.b16 %v385
        %v460 = vunpack.c.l.b16 %v386
        %v461 = vunpack.c.l.b16 %v387
        %v462 = vpack.c.b16 %v431, %v430
        %v463 = vpack.c.b16 %v433, %v432
        %v464 = vpack.c.b16 %v435, %v434
        %v465 = vpack.c.b16 %v437, %v436
        %v466 = vpack.c.b16 %v439, %v438
        %v467 = vpack.c.b16 %v441, %v440
        %v468 = vpack.c.b16 %v443, %v442
        %v469 = vpack.c.b16 %v445, %v444
        %v470 = vpack.c.b16 %v447, %v446
        %v471 = vpack.c.b16 %v449, %v448
        %v472 = vpack.c.b16 %v451, %v450
        %v473 = vpack.c.b16 %v453, %v452
        %v474 = vpack.c.b16 %v455, %v454
        %v475 = vpack.c.b16 %v457, %v456
        %v476 = vpack.c.b16 %v459, %v458
        %v477 = vpack.c.b16 %v461, %v460
        %494 = vmatprep.subr.bf16.mxu0 0
        %495 = vmatpush1.bf16.msra.mxu0 %v462
        %496 = vmatprep.subr.bf16.mxu0 0
        %497 = vmatpush1.bf16.msra.mxu0 %v463
        %498 = vmatprep.subr.bf16.mxu0 0
        %499 = vmatpush1.bf16.msra.mxu0 %v464
        %500 = vmatprep.subr.bf16.mxu0 0
        %501 = vmatpush1.bf16.msra.mxu0 %v465
        %502 = vmatprep.subr.bf16.mxu0 0
        %503 = vmatpush1.bf16.msra.mxu0 %v466
        %504 = vmatprep.subr.bf16.mxu0 0
        %505 = vmatpush1.bf16.msra.mxu0 %v467
        %506 = vmatprep.subr.bf16.mxu0 0
        %507 = vmatpush1.bf16.msra.mxu0 %v468
        %508 = vmatprep.subr.bf16.mxu0 0
        %509 = vmatpush1.bf16.msra.mxu0 %v469
        %510 = vmatprep.subr.bf16.mxu0 0
        %511 = vmatpush1.bf16.msra.mxu0 %v470
        %512 = vmatprep.subr.bf16.mxu0 0
        %513 = vmatpush1.bf16.msra.mxu0 %v471
        %514 = vmatprep.subr.bf16.mxu0 0
        %515 = vmatpush1.bf16.msra.mxu0 %v472
        %516 = vmatprep.subr.bf16.mxu0 0
        %517 = vmatpush1.bf16.msra.mxu0 %v473
        %518 = vmatprep.subr.bf16.mxu0 0
        %519 = vmatpush1.bf16.msra.mxu0 %v474
        %520 = vmatprep.subr.bf16.mxu0 0
        %521 = vmatpush1.bf16.msra.mxu0 %v475
        %522 = vmatprep.subr.bf16.mxu0 0
        %523 = vmatpush1.bf16.msra.mxu0 %v476
        %524 = vmatprep.subr.bf16.mxu0 0
        %525 = vmatpush1.bf16.msra.mxu0 %v477
        %526 = vmatprep.mubr.bf16.mxu0 %v395
        %527 = vmatmul.mubr.bf16.gmra.mrb[0].mxu0 %v394
        %v528 = vpop.f32.mrb[0].mxu0
        %v529 = vadd.f32 0.0, %v528
        %v530 = vpop.f32.mrb[0].mxu0
        %v531 = vpop.f32.mrb[0].mxu0
        %v532 = vadd.f32 0.0, %v531
        %v533 = vpop.f32.mrb[0].mxu0
        %534 = vdwg.mxu0
        %v535 = vadd.f32 %v352, %v529
        %v536 = vadd.f32 %v353, %v532
        %537 = vst [vmem:[#allocation2] sm:$0xff] %v535
        %538 = vst [vmem:[#allocation2 + $0x8] sm:$0xff] %v536
        // Predicated region
        $region83: #{_synthetic_noise_padded.1} parent=69 // pred_check
          %p539 = pneg %p346
        $region84: #{_synthetic_noise_padded.1} parent=69 // pred_check_branch
          %541 = sbr.rel (%p539) target = $region86
        $region85: #{_synthetic_noise_padded.1} parent=69 // pred_region
          %s542 = sld [smem:[#allocation3]]
          %s543 = ssub.f32 1.0, %s542
          %v544 = vld [vmem:[%s293] sm:$0xff]
          %v545 = vld [vmem:[%s293 + $0x8] sm:$0xff]
          %v546 = vstv %s543
          %v547 = vmul.f32 %v546, %v544
          %v548 = vmul.f32 %v546, %v545
          %v549 = vld [vmem:[#allocation2] sm:$0xff]
          %v550 = vld [vmem:[#allocation2 + $0x8] sm:$0xff]
          %v551 = vstv %s542
          %v552 = vmul.f32 %v551, %v549
          %v553 = vmul.f32 %v551, %v550
          %v554 = vadd.f32 %v547, %v552
          %v555 = vadd.f32 %v548, %v553
          %556 = vst [vmem:[%s329] sm:$0xff] %v554
          %557 = vst [vmem:[%s329 + $0x8] sm:$0xff] %v555
        $region86: #{_synthetic_noise_padded.1} parent=69 // pred_fallthru
          _
        %s558 = sand.u32 %s153, 1
        %s559 = sand.u32 %s153, 1
        %s560 = smul.addr %s559, 16
        %s561 = scalar_lea.vmem [#allocation7], %s560
        // Predicated region
        $region87: #{_synthetic_noise_padded.1} parent=69 // pred_check
          %p562 = pneg %p163
        $region88: #{_synthetic_noise_padded.1} parent=69 // pred_check_branch
          %564 = sbr.rel (%p562) target = $region90
        $region89: #{_synthetic_noise_padded.1} parent=69 // pred_region
          %s565 = smul.u32 2, %s24
          %s566 = smul.addr %s565, 2
          %s567 = sadd.s32 %s25, %s566
          %s568 = smul.addr %s567, 8
          %s569 = scalar_lea.vmem %s4, %s568
          // Predicated region
          $region91: #{_synthetic_noise_padded.1} parent=89 // pred_check
            _
          $region92: #{_synthetic_noise_padded.1} parent=89 // pred_check_branch
            %571 = sbr.rel (0) target = $region94
          $region93: #{_synthetic_noise_padded.1} parent=89 // pred_region
            // Predicated region
            $region95: #{_synthetic_noise_padded.1} parent=93 // pred_check
              _
            $region96: #{_synthetic_noise_padded.1} parent=93 // pred_check_branch
              %573 = sbr.rel (0) target = $region98
            $region97: #{_synthetic_noise_padded.1} parent=93 // pred_region
              // Predicated region
              $region110: #{_synthetic_noise_padded.1} parent=97 // pred_check
                _
              $region111: #{_synthetic_noise_padded.1} parent=97 // pred_check_branch
                %590 = sbr.rel (0) target = $region113
              $region112: #{_synthetic_noise_padded.1} parent=97 // pred_region
                loop: start=0, step=1, limit=1
                $region114: #{_synthetic_noise_padded.1} parent=112 // loop_pre_header
                  _
                $region115: #{_synthetic_noise_padded.1} parent=112 // loop_header
                  %s592 = sphi 0, %s596
                  %p593 = scmp.ge.s32.totalorder %s592, 1
                  %s597 = sphi %s561, %s561
                  %s598 = sphi %s569, %s569
                $region116: #{_synthetic_noise_padded.1} parent=112 // loop_header_branch
                  %595 = sbr.rel (%p593) target = $region120
                $region117: #{_synthetic_noise_padded.1} parent=112 // loop_body
                  %v599 = vld [vmem:[%s597] sm:$0xff]
                  %600 = vst [vmem:[%s598] sm:$0xff] %v599
                  %v601 = vld [vmem:[%s597 + $0x8] sm:$0xff]
                  %602 = vst [vmem:[%s598 + $0x10] sm:$0xff] %v601
                $region118: #{_synthetic_noise_padded.1} parent=112 // loop_footer
                  %s596 = sadd.s32 1, %s592
                $region119: #{_synthetic_noise_padded.1} parent=112 // loop_footer_branch
                  %591 = sbr.rel target = $region115
                $region120: #{_synthetic_noise_padded.1} parent=112 // loop_exit
                  _
              $region113: #{_synthetic_noise_padded.1} parent=97 // pred_fallthru
                _
              // Predicated region
              $region121: #{_synthetic_noise_padded.1} parent=97 // pred_check
                _
              $region122: #{_synthetic_noise_padded.1} parent=97 // pred_check_branch
                %604 = sbr.rel target = $region124
              $region123: #{_synthetic_noise_padded.1} parent=97 // pred_region
                _
              $region124: #{_synthetic_noise_padded.1} parent=97 // pred_fallthru
                _
            $region98: #{_synthetic_noise_padded.1} parent=93 // pred_fallthru
              _
            // Predicated region
            $region99: #{_synthetic_noise_padded.1} parent=93 // pred_check
              _
            $region100: #{_synthetic_noise_padded.1} parent=93 // pred_check_branch
              %575 = sbr.rel target = $region102
            $region101: #{_synthetic_noise_padded.1} parent=93 // pred_region
              loop: start=0, step=1, limit=1
              $region103: #{_synthetic_noise_padded.1} parent=101 // loop_pre_header
                _
              $region104: #{_synthetic_noise_padded.1} parent=101 // loop_header
                %s578 = sphi 0, %s582
                %p579 = scmp.ge.s32.totalorder %s578, 1
                %s583 = sphi %s561, %s561
                %s584 = sphi %s569, %s569
              $region105: #{_synthetic_noise_padded.1} parent=101 // loop_header_branch
                %581 = sbr.rel (%p579) target = $region109
              $region106: #{_synthetic_noise_padded.1} parent=101 // loop_body
                %v585 = vld [vmem:[%s583] sm:$0xff]
                %586 = vst [vmem:[%s584] sm:$0xff] %v585
                %v587 = vld [vmem:[%s583 + $0x8] sm:$0xff]
                %588 = vst [vmem:[%s584 + $0x10] sm:$0xff] %v587
              $region107: #{_synthetic_noise_padded.1} parent=101 // loop_footer
                %s582 = sadd.s32 1, %s578
              $region108: #{_synthetic_noise_padded.1} parent=101 // loop_footer_branch
                %577 = sbr.rel target = $region104
              $region109: #{_synthetic_noise_padded.1} parent=101 // loop_exit
                _
            $region102: #{_synthetic_noise_padded.1} parent=93 // pred_fallthru
              _
          $region94: #{_synthetic_noise_padded.1} parent=89 // pred_fallthru
            _
          %605 = vnop
        $region90: #{_synthetic_noise_padded.1} parent=69 // pred_fallthru
          _
      $region70: #{_synthetic_noise_padded.1} parent=5 // pred_fallthru
        _
      %p606 = scmp.le.s32.totalorder 2, %s14
      // Predicated region
      $region125: #{_synthetic_noise_padded.1} parent=5 // pred_check
        %p607 = pneg %p606
      $region126: #{_synthetic_noise_padded.1} parent=5 // pred_check_branch
        %609 = sbr.rel (%p607) target = $region128
      $region127: #{_synthetic_noise_padded.1} parent=5 // pred_region
        %s610 = ssub.s32 %s14, 2
        // Predicated region
        $region129: #{_synthetic_noise_padded.1} parent=127 // pred_check
          %p611 = pneg %p169
        $region130: #{_synthetic_noise_padded.1} parent=127 // pred_check_branch
          %613 = sbr.rel (%p611) target = $region132
        $region131: #{_synthetic_noise_padded.1} parent=127 // pred_region
          %s614 = sand.u32 %s154, 1
          %s615 = sand.u32 %s154, 1
          %s616 = smul.addr %s615, 16
          %s617 = scalar_lea.vmem [#allocation7], %s616
        $region132: #{_synthetic_noise_padded.1} parent=127 // pred_fallthru
          _
      $region128: #{_synthetic_noise_padded.1} parent=5 // pred_fallthru
        _
    $region6: #{_synthetic_noise_padded.1} parent=1 // loop_footer
      %s18 = sadd.s32 1, %s14
    $region7: #{_synthetic_noise_padded.1} parent=1 // loop_footer_branch
      %13 = sbr.rel target = $region3
    $region8: #{_synthetic_noise_padded.1} parent=1 // loop_exit
      _
    %618 = vsyncpa [#allocation5], 1
    %s619 = scalar_lea.sflag [#allocation5], 1
    %620 = vsyncpa %s619, 1

</llo_original>
